<compile_context>
chip_gen: v7x
topology: tpu7x:2x2x1
jax: 0.10.0
libtpu: 0.0.40
codegen_flags: <defaults>
</compile_context>

<pallas_src>
import functools

import jax
import jax.numpy as jnp
from jax.experimental import pallas as pl
from jax.experimental.pallas import tpu as pltpu


def _round_up(x, m):
    return ((x + m - 1) // m) * m


def _largest_divisor_leq(n, cap):
    cap = max(1, min(n, cap))
    for d in range(cap, 0, -1):
        if n % d == 0:
            return d
    return 1


def _conv1x1_sigmoid_kernel(w_ref, x_ref, b_ref, o_ref):
    # w_ref: (O, C)            x_ref: (Bblk, C, tp)
    # b_ref: (O, 1) f32        o_ref: (Bblk, O, tp)
    w = w_ref[...]
    bias = b_ref[...]
    # Static unroll over the (small) batch block: one lane-dense (O, tp) matmul
    # + epilogue per batch row; no cross-lane/sublane transposes anywhere.
    for bb in range(o_ref.shape[0]):
        acc = jnp.dot(w, x_ref[bb], preferred_element_type=jnp.float32)
        acc = acc + bias                              # (O, 1) broadcast, f32
        # sigmoid(x) = 0.5 * tanh(0.5 * x) + 0.5  -> single EUP transcendental.
        o_ref[bb] = (0.5 * jnp.tanh(0.5 * acc) + 0.5).astype(o_ref.dtype)


def _conv1x1_sigmoid(x, w, b, *, col_budget=16384, max_batch_block=32,
                     out_dtype=jnp.float32):
    """x: (B, C, P), w: (O, C), b: (O, 1) f32  ->  (B, O, P) in out_dtype."""
    B, C, P = x.shape
    O = w.shape[0]

    col_budget = max(128, _round_up(int(col_budget), 128))

    # ---- pixel tile (lane axis) ------------------------------------------
    if P >= col_budget:
        # Big images: fixed lane-dense tile; last tile may be partial (OOB
        # reads don't-care, OOB writes discarded).  No padding, no post-slice.
        tp = col_budget
    else:
        # Small images: take the whole pixel extent per step (exact; if P is
        # not a multiple of 128 only the tail vreg store is masked).
        tp = P
    n_ptiles = -(-P // tp)

    # ---- batch block (amortize per-step overhead when H*W is small) -------
    bblk = _largest_divisor_leq(B, max(1, min(max_batch_block, col_budget // tp)))
    # v7x runs 2 TensorCores: keep at least 2 grid steps when possible so both
    # cores get work (irrelevant on single-TC v5e/v6e).
    if (B // bblk) * n_ptiles < 2 and bblk > 1:
        bblk = _largest_divisor_leq(B, bblk // 2)

    grid = (B // bblk, n_ptiles)          # both axes independent -> "parallel"

    # Scoped-VMEM budget: double-buffered x/out blocks + headroom.  Floor of
    # 32 MiB (covers the default budget with room to spare), capped at 48 MiB
    # so v7x (64 MiB physical VMEM) keeps pipeline headroom.
    x_blk_bytes = bblk * max(C, 8) * tp * x.dtype.itemsize
    o_blk_bytes = bblk * max(O, 8) * tp * jnp.dtype(out_dtype).itemsize
    vmem_limit = min(48 << 20,
                     max(32 << 20, 2 * (x_blk_bytes + o_blk_bytes) + (4 << 20)))

    return pl.pallas_call(
        _conv1x1_sigmoid_kernel,
        out_shape=jax.ShapeDtypeStruct((B, O, P), out_dtype),
        grid_spec=pltpu.PrefetchScalarGridSpec(
            num_scalar_prefetch=0,
            grid=grid,
            in_specs=[
                # Weight / bias are grid-invariant (constant block index), so
                # Pallas skips their re-DMA across grid steps.
                pl.BlockSpec((O, C), lambda bi, pi: (0, 0)),
                pl.BlockSpec((bblk, C, tp), lambda bi, pi: (bi, 0, pi)),
                pl.BlockSpec((O, 1), lambda bi, pi: (0, 0)),
            ],
            out_specs=pl.BlockSpec((bblk, O, tp), lambda bi, pi: (bi, 0, pi)),
        ),
        compiler_params=pltpu.CompilerParams(
            dimension_semantics=("parallel", "parallel"),
            vmem_limit_bytes=int(vmem_limit),
        ),
    )(w, x, b)


def attention_conv_sigmoid_mk1_forward(feats, weight, bias, *, maxT, n_parts,
                                       col_budget=16384,
                                       out_dtype=jnp.float32):
    """feats: (B, C, H, W) NCHW; weight: (O, C) or (O, C, 1, 1); bias: (O,).

    Returns (B, maxT, n_parts, H, W).  out_dtype=float32 matches the PyTorch
    module; bf16 output is available as a bandwidth option (semantics change).
    """
    B, C, H, W = feats.shape
    O = maxT * n_parts
    w2 = weight.reshape(O, C).astype(feats.dtype)
    b2 = bias.reshape(O, 1).astype(jnp.float32)

    # NCHW-native view (no transposes, no dtype relayout): (B, C, H*W).
    x = feats.reshape(B, C, H * W)

    out = _conv1x1_sigmoid(x, w2, b2, col_budget=col_budget,
                           out_dtype=out_dtype)          # (B, O, H*W)
    return out.reshape(B, maxT, n_parts, H, W)


if __name__ == "__main__":
    # Small shapes consistent with the module.
    B, C, H, W = 2, 4, 16, 16
    maxT, n_parts = 8, 4
    O = maxT * n_parts

    key = jax.random.PRNGKey(0)
    k_x, k_w, k_b = jax.random.split(key, 3)

    feats = jax.random.normal(k_x, (B, C, H, W), dtype=jnp.float32)
    # Conv2d(C, O, 1) parameters: weight (O, C), bias (O,).
    weight = jax.random.normal(k_w, (O, C), dtype=jnp.float32) * 0.1
    bias = jax.random.normal(k_b, (O,), dtype=jnp.float32) * 0.1

    fwd = jax.jit(
        functools.partial(attention_conv_sigmoid_mk1_forward,
                          maxT=maxT, n_parts=n_parts)
    )
    out = fwd(feats, weight, bias)
    jax.block_until_ready(out)

    # Pure-JAX f32 reference (1x1 conv == einsum over channel).
    ref = jax.nn.sigmoid(
        jnp.einsum("bchw,oc->bohw", feats, weight) + bias[None, :, None, None]
    ).reshape(B, maxT, n_parts, H, W)

    assert out.shape == (B, maxT, n_parts, H, W)
    max_diff = float(jnp.max(jnp.abs(out.astype(jnp.float32) - ref)))
    assert max_diff < 1e-5, "max abs diff = %f" % max_diff

    print("KERNEL_OK")
</pallas_src>

<mosaic_0001>
module attributes {stable_mosaic.version = 11 : i64} {
  func.func @_conv1x1_sigmoid_kernel(%arg0: i32, %arg1: i32, %arg2: memref<32x4xf32, #tpu.memory_space<vmem>>, %arg3: memref<1x4x256xf32, #tpu.memory_space<vmem>>, %arg4: memref<32x1xf32, #tpu.memory_space<vmem>>, %arg5: memref<1x32x256xf32, #tpu.memory_space<vmem>>) attributes {dimension_semantics = [#tpu.dimension_semantics<parallel>, #tpu.dimension_semantics<parallel>], iteration_bounds = array<i64: 2, 1>, scalar_prefetch = 0 : i64, scratch_operands = 0 : i64, tpu.core_type = #tpu.core_type<tc>, window_params = [{pipeline_mode = #tpu.pipeline_mode<synchronous>, transform_indices = @transform_0, window_bounds = array<i64: 32, 4>}, {transform_indices = @transform_1, window_bounds = array<i64: 1, 4, 256>}, {pipeline_mode = #tpu.pipeline_mode<synchronous>, transform_indices = @transform_2, window_bounds = array<i64: 32, 1>}, {transform_indices = @transform_3, window_bounds = array<i64: 1, 32, 256>}]} {
    %c0 = arith.constant 0 : index
    %c0_0 = arith.constant 0 : index
    %0 = vector.load %arg2[%c0, %c0_0] : memref<32x4xf32, #tpu.memory_space<vmem>>, vector<32x4xf32>
    %c0_1 = arith.constant 0 : index
    %c0_2 = arith.constant 0 : index
    %1 = vector.load %arg4[%c0_1, %c0_2] : memref<32x1xf32, #tpu.memory_space<vmem>>, vector<32x1xf32>
    %c0_3 = arith.constant 0 : index
    %c0_4 = arith.constant 0 : index
    %c0_5 = arith.constant 0 : index
    %2 = vector.load %arg3[%c0_3, %c0_4, %c0_5] : memref<1x4x256xf32, #tpu.memory_space<vmem>>, vector<1x4x256xf32>
    %3 = vector.shape_cast %2 : vector<1x4x256xf32> to vector<4x256xf32>
    %cst = arith.constant dense<0.000000e+00> : vector<32x256xf32>
    %4 = tpu.matmul %0, %3, %cst {dimension_numbers = #tpu.dot_dimension_numbers<[1], [0], [0], [1], [0, 0, 1, 1], [], []>} : vector<32x4xf32>, vector<4x256xf32>, vector<32x256xf32> -> vector<32x256xf32>
    %5 = vector.broadcast %1 : vector<32x1xf32> to vector<32x256xf32>
    %6 = arith.addf %4, %5 : vector<32x256xf32>
    %cst_6 = arith.constant 5.000000e-01 : f32
    %7 = vector.broadcast %cst_6 : f32 to vector<32x256xf32>
    %8 = arith.mulf %7, %6 : vector<32x256xf32>
    %9 = math.tanh %8 : vector<32x256xf32>
    %cst_7 = arith.constant 5.000000e-01 : f32
    %10 = vector.broadcast %cst_7 : f32 to vector<32x256xf32>
    %11 = arith.mulf %10, %9 : vector<32x256xf32>
    %cst_8 = arith.constant 5.000000e-01 : f32
    %12 = vector.broadcast %cst_8 : f32 to vector<32x256xf32>
    %13 = arith.addf %11, %12 : vector<32x256xf32>
    %c0_9 = arith.constant 0 : index
    %c0_10 = arith.constant 0 : index
    %c0_11 = arith.constant 0 : index
    %14 = vector.load %arg5[%c0_9, %c0_10, %c0_11] : memref<1x32x256xf32, #tpu.memory_space<vmem>>, vector<1x32x256xf32>
    %15 = vector.shape_cast %14 : vector<1x32x256xf32> to vector<32x256xf32>
    %16 = vector.shape_cast %13 : vector<32x256xf32> to vector<1x32x256xf32>
    tpu.vector_store %arg5[%c0_9, %c0_10, %c0_11], %16 {strides = array<i32>} : memref<1x32x256xf32, #tpu.memory_space<vmem>>, vector<1x32x256xf32>,
    return
  }
  func.func @transform_0(%arg0: i32, %arg1: i32) -> (i32, i32) {
    %c0_i32 = arith.constant 0 : i32
    %c0_i32_0 = arith.constant 0 : i32
    %c0_i32_1 = arith.constant 0 : i32
    return %c0_i32, %c0_i32_0 : i32, i32
  }
  func.func @transform_1(%arg0: i32, %arg1: i32) -> (i32, i32, i32) {
    %c0_i32 = arith.constant 0 : i32
    %c0_i32_0 = arith.constant 0 : i32
    return %arg0, %c0_i32, %arg1 : i32, i32, i32
  }
  func.func @transform_2(%arg0: i32, %arg1: i32) -> (i32, i32) {
    %c0_i32 = arith.constant 0 : i32
    %c0_i32_0 = arith.constant 0 : i32
    %c0_i32_1 = arith.constant 0 : i32
    return %c0_i32, %c0_i32_0 : i32, i32
  }
  func.func @transform_3(%arg0: i32, %arg1: i32) -> (i32, i32, i32) {
    %c0_i32 = arith.constant 0 : i32
    %c0_i32_0 = arith.constant 0 : i32
    return %arg0, %c0_i32, %arg1 : i32, i32, i32
  }
}

</mosaic_0001>

<llo_original>
// kernel: attention_conv_sigmoid_mk1_forward.1
$region0: #{attention_conv_sigmoid_mk1_forward.1}
  #allocation0 [shape = 'u32[]', space=smem, size = 0x4, offset = 0x4, fixed_abs, tag = 'smem constant byte address 0x4 - core index']
  #allocation1 [shape = 'u32[144,128]{1,0:T(1,128)}', space=vmem, size = 0x12000, scoped, tag = 'internal scratch']
  %s0 = inlined_call_operand.vmem [shape: f32[32,4], index: 0, kind: input, shape index: {}]
  %s1 = inlined_call_operand.vmem [shape: f32[2,4,256], index: 1, kind: input, shape index: {}]
  %s2 = inlined_call_operand.vmem [shape: f32[32,1], index: 2, kind: input, shape index: {}]
  %s3 = inlined_call_operand.vmem [shape: f32[2,32,256], index: 3, kind: output, shape index: {}]
  %s4 = sld [smem:[#allocation0]]
  $region45: #{attention_conv_sigmoid_mk1_forward.1} parent=0
    _
  %s6 = ssub.s32 1, %s4
  %s7 = scalar_select 0, %s6, %s4
  loop: start=0, step=1, limit=4
  $region2: #{attention_conv_sigmoid_mk1_forward.1} parent=0 // loop_pre_header
    _
  $region3: #{attention_conv_sigmoid_mk1_forward.1} parent=0 // loop_header
    %s9 = sphi 0, %s13
    %p10 = scmp.ge.s32.totalorder %s9, 4
    %s16 = sphi 0, %s28
    %s17 = sphi 0, %s24
    %s18 = sphi 0, %s16
    %s19 = sphi 0, %s17
    %s20 = sphi 0, %s18
    %s21 = sphi 0, %s19
    %s29 = sphi 0, %s29
    %s31 = sphi 0, %s29
    %s32 = sphi 0, %s31
    %s46 = sphi 0, %s32
    %s54 = sphi 0, %s56
    %s57 = sphi 0, %s54
    %s58 = sphi 0, %s57
    %s74 = sphi 0, %s58
    %s78 = sphi 0, %s78
    %s80 = sphi 0, %s78
    %s81 = sphi 0, %s80
    %s95 = sphi 0, %s81
    %s103 = sphi 0, %s105
    %s106 = sphi 0, %s103
    %s107 = sphi 0, %s106
    %s123 = sphi 0, %s107
  $region4: #{attention_conv_sigmoid_mk1_forward.1} parent=0 // loop_header_branch
    %12 = sbr.rel (%p10) target = $region8
  $region5: #{attention_conv_sigmoid_mk1_forward.1} parent=0 // loop_body
    %s14 = ssub.s32 %s9, 1
    %s15 = ssub.s32 %s9, 2
    %s22 = sadd.s32 1, %s17
    %p23 = scmp.ge.s32.totalorder %s22, 1
    %s24 = scalar_select %p23, 0, %s22
    %s25 = sadd.s32 1, %s16
    %s26 = scalar_select %p23, %s25, %s16
    %p27 = scmp.ge.s32.totalorder %s26, 2
    %s28 = scalar_select %p27, 0, %s26
    %s30 = sadd.s32 %s29, 1
    %p33 = scmp.eq.s32.totalorder %s9, 1
    %p34 = scmp.ne.s32.totalorder %s29, %s31
    %p35 = scmp.eq.s32.totalorder %s9, 0
    %p36 = por %p34, %p35
    %p37 = scmp.ne.s32.totalorder %s29, %s31
    %p38 = scmp.eq.s32.totalorder %s14, 1
    %p39 = por %p37, %p38
    %p40 = scmp.ne.s32.totalorder %s31, %s32
    %p41 = scmp.eq.s32.totalorder %s14, 0
    %p42 = por %p40, %p41
    %p43 = scmp.ne.s32.totalorder %s31, %s32
    %p44 = scmp.eq.s32.totalorder %s15, 1
    %p45 = por %p43, %p44
    %p47 = scmp.ne.s32.totalorder %s32, %s46
    %p48 = scmp.eq.s32.totalorder %s15, 0
    %p49 = por %p47, %p48
    %s50 = ssub.s32 %s16, %s28
    %s51 = ssub.s32 %s17, %s24
    %s52 = sor.u32 %s50, %s51
    %p53 = scmp.eq.s32.totalorder %s52, 0
    %s55 = sadd.s32 %s54, 1
    %s56 = scalar_select %p53, %s54, %s55
    %p59 = pneg %p53
    %p60 = scmp.eq.s32.totalorder %s9, 1
    %p61 = por %p59, %p60
    %p62 = scmp.ne.s32.totalorder %s54, %s57
    %p63 = scmp.eq.s32.totalorder %s9, 0
    %p64 = por %p62, %p63
    %p65 = scmp.ne.s32.totalorder %s54, %s57
    %p66 = scmp.eq.s32.totalorder %s14, 1
    %p67 = por %p65, %p66
    %p68 = scmp.ne.s32.totalorder %s57, %s58
    %p69 = scmp.eq.s32.totalorder %s14, 0
    %p70 = por %p68, %p69
    %p71 = scmp.ne.s32.totalorder %s57, %s58
    %p72 = scmp.eq.s32.totalorder %s15, 1
    %p73 = por %p71, %p72
    %p75 = scmp.ne.s32.totalorder %s58, %s74
    %p76 = scmp.eq.s32.totalorder %s15, 0
    %p77 = por %p75, %p76
    %s79 = sadd.s32 %s78, 1
    %p82 = scmp.eq.s32.totalorder %s9, 1
    %p83 = scmp.ne.s32.totalorder %s78, %s80
    %p84 = scmp.eq.s32.totalorder %s9, 0
    %p85 = por %p83, %p84
    %p86 = scmp.ne.s32.totalorder %s78, %s80
    %p87 = scmp.eq.s32.totalorder %s14, 1
    %p88 = por %p86, %p87
    %p89 = scmp.ne.s32.totalorder %s80, %s81
    %p90 = scmp.eq.s32.totalorder %s14, 0
    %p91 = por %p89, %p90
    %p92 = scmp.ne.s32.totalorder %s80, %s81
    %p93 = scmp.eq.s32.totalorder %s15, 1
    %p94 = por %p92, %p93
    %p96 = scmp.ne.s32.totalorder %s81, %s95
    %p97 = scmp.eq.s32.totalorder %s15, 0
    %p98 = por %p96, %p97
    %s99 = ssub.s32 %s16, %s28
    %s100 = ssub.s32 %s17, %s24
    %s101 = sor.u32 %s99, %s100
    %p102 = scmp.eq.s32.totalorder %s101, 0
    %s104 = sadd.s32 %s103, 1
    %s105 = scalar_select %p102, %s103, %s104
    %p108 = pneg %p102
    %p109 = scmp.eq.s32.totalorder %s9, 1
    %p110 = por %p108, %p109
    %p111 = scmp.ne.s32.totalorder %s103, %s106
    %p112 = scmp.eq.s32.totalorder %s9, 0
    %p113 = por %p111, %p112
    %p114 = scmp.ne.s32.totalorder %s103, %s106
    %p115 = scmp.eq.s32.totalorder %s14, 1
    %p116 = por %p114, %p115
    %p117 = scmp.ne.s32.totalorder %s106, %s107
    %p118 = scmp.eq.s32.totalorder %s14, 0
    %p119 = por %p117, %p118
    %p120 = scmp.ne.s32.totalorder %s106, %s107
    %p121 = scmp.eq.s32.totalorder %s15, 1
    %p122 = por %p120, %p121
    %p124 = scmp.ne.s32.totalorder %s107, %s123
    %p125 = scmp.eq.s32.totalorder %s15, 0
    %p126 = por %p124, %p125
    %p127 = scmp.le.s32.totalorder 1, %s9
    %p128 = scmp.lt.s32.totalorder %s9, 3
    %p129 = pnand %p127, %p128
    %p130 = pneg %p129
    // Predicated region
    $region9: #{attention_conv_sigmoid_mk1_forward.1} parent=5 // pred_check
      _
    $region10: #{attention_conv_sigmoid_mk1_forward.1} parent=5 // pred_check_branch
      %132 = sbr.rel (%p129) target = $region12
    $region11: #{attention_conv_sigmoid_mk1_forward.1} parent=5 // pred_region
      %s133 = ssub.s32 %s9, 1
      // Predicated region
      $region13: #{attention_conv_sigmoid_mk1_forward.1} parent=11 // pred_check
        %p134 = pneg %p42
      $region14: #{attention_conv_sigmoid_mk1_forward.1} parent=11 // pred_check_branch
        %136 = sbr.rel (%p134) target = $region16
      $region15: #{attention_conv_sigmoid_mk1_forward.1} parent=11 // pred_region
        _
      $region16: #{attention_conv_sigmoid_mk1_forward.1} parent=11 // pred_fallthru
        _
      // Predicated region
      $region17: #{attention_conv_sigmoid_mk1_forward.1} parent=11 // pred_check
        %p137 = pneg %p91
      $region18: #{attention_conv_sigmoid_mk1_forward.1} parent=11 // pred_check_branch
        %139 = sbr.rel (%p137) target = $region20
      $region19: #{attention_conv_sigmoid_mk1_forward.1} parent=11 // pred_region
        _
      $region20: #{attention_conv_sigmoid_mk1_forward.1} parent=11 // pred_fallthru
        _
    $region12: #{attention_conv_sigmoid_mk1_forward.1} parent=5 // pred_fallthru
      _
    %p140 = scmp.lt.s32.totalorder %s9, 2
    // Predicated region
    $region21: #{attention_conv_sigmoid_mk1_forward.1} parent=5 // pred_check
      %p141 = pneg %p140
    $region22: #{attention_conv_sigmoid_mk1_forward.1} parent=5 // pred_check_branch
      %143 = sbr.rel (%p141) target = $region24
    $region23: #{attention_conv_sigmoid_mk1_forward.1} parent=5 // pred_region
      // Predicated region
      $region25: #{attention_conv_sigmoid_mk1_forward.1} parent=23 // pred_check
        %p144 = pneg %p64
      $region26: #{attention_conv_sigmoid_mk1_forward.1} parent=23 // pred_check_branch
        %146 = sbr.rel (%p144) target = $region28
      $region27: #{attention_conv_sigmoid_mk1_forward.1} parent=23 // pred_region
        %s147 = smul.u32 2, %s17
        %p148 = scmp.lt.s32.totalorder %s16, 1
        %s149 = scalar_select %p148, %s16, 1
        %p150 = scmp.lt.s32.totalorder %s147, 1
        %s151 = scalar_select %p150, %s147, 1
        %s152 = smul.addr %s149, 2
        %s153 = sadd.s32 %s151, %s152
        %s154 = smul.addr %s153, 4
        %s155 = scalar_lea.vmem %s1, %s154
        %s156 = smul.u32 2, %s17
      $region28: #{attention_conv_sigmoid_mk1_forward.1} parent=23 // pred_fallthru
        _
    $region24: #{attention_conv_sigmoid_mk1_forward.1} parent=5 // pred_fallthru
      _
    %p157 = scmp.le.s32.totalorder 1, %s9
    %p158 = scmp.lt.s32.totalorder %s9, 3
    %p159 = pnand %p157, %p158
    %p160 = pneg %p159
    // Predicated region
    $region29: #{attention_conv_sigmoid_mk1_forward.1} parent=5 // pred_check
      _
    $region30: #{attention_conv_sigmoid_mk1_forward.1} parent=5 // pred_check_branch
      %162 = sbr.rel (%p159) target = $region32
    $region31: #{attention_conv_sigmoid_mk1_forward.1} parent=5 // pred_region
      %s163 = ssub.s32 %s9, 1
      %p164 = pneg %p42
      %p165 = pneg %p39
      %s166 = smul.u32 2, %s19
      %p167 = scmp.lt.s32.totalorder %s18, 1
      %s168 = scalar_select %p167, %s18, 1
      %p169 = scmp.lt.s32.totalorder %s166, 1
      %s170 = scalar_select %p169, %s166, 1
      %s171 = smul.addr %s168, 2
      %s172 = sadd.s32 %s170, %s171
      %s173 = smul.addr %s172, 4
      %s174 = scalar_lea.vmem %s1, %s173
      %p175 = pneg %p70
      %p176 = pneg %p67
      %p177 = pneg %p91
      %p178 = pneg %p88
      %p179 = pneg %p119
      %p180 = pneg %p116
      %s181 = smul.u32 2, %s19
      %p182 = scmp.lt.s32.totalorder %s18, 1
      %s183 = scalar_select %p182, %s18, 1
      %p184 = scmp.lt.s32.totalorder %s181, 1
      %s185 = scalar_select %p184, %s181, 1
      %s186 = smul.addr %s183, 8
      %s187 = sadd.s32 %s185, %s186
      %s188 = smul.addr %s187, 8
      %s189 = scalar_lea.vmem %s3, %s188
      %s190 = smul.u32 2, %s19
      %p191 = scmp.lt.s32.totalorder %s18, 1
      %s192 = scalar_select %p191, %s18, 1
      %p193 = scmp.lt.s32.totalorder %s190, 1
      %s194 = scalar_select %p193, %s190, 1
      %s195 = smul.addr %s192, 2
      %s196 = sadd.s32 %s194, %s195
      %s197 = smul.addr %s196, 4
      %s198 = scalar_lea.vmem %s1, %s197
      %s199 = smul.u32 2, %s19
      %s200 = smul.u32 2, %s19
      %p201 = scmp.lt.s32.totalorder %s18, 1
      %s202 = scalar_select %p201, %s18, 1
      %p203 = scmp.lt.s32.totalorder %s200, 1
      %s204 = scalar_select %p203, %s200, 1
      %s205 = smul.addr %s202, 8
      %s206 = sadd.s32 %s204, %s205
      %s207 = smul.addr %s206, 8
      %s208 = scalar_lea.vmem %s3, %s207
      %s209 = smul.u32 2, %s19
      %v210 = vld [vmem:[%s0] sm:$0xff]
      %v211 = vld [vmem:[%s0 + $0x8] sm:$0xff]
      %v212 = vld [vmem:[%s0 + $0x10] sm:$0xff]
      %v213 = vld [vmem:[%s0 + $0x18] sm:$0xff]
      %v214 = vld [vmem:[%s2] sm:$0xff]
      %v215 = vld [vmem:[%s2 + $0x8] sm:$0xff]
      %v216 = vld [vmem:[%s2 + $0x10] sm:$0xff]
      %v217 = vld [vmem:[%s2 + $0x18] sm:$0xff]
      %v218 = vld [vmem:[%s198] sm:$0xff]
      %220 = vset.pattern.permute.xlu0 0
      %221 = vperm.xlu0 %220, %v214
      %v222 = vpop.permute.xlu0 %221
      %225 = vset.pattern.permute.xlu0 0
      %226 = vperm.xlu0 %225, %v215
      %v227 = vpop.permute.xlu0 %226
      %230 = vset.pattern.permute.xlu0 0
      %231 = vperm.xlu0 %230, %v216
      %v232 = vpop.permute.xlu0 %231
      %235 = vset.pattern.permute.xlu0 0
      %236 = vperm.xlu0 %235, %v217
      %v237 = vpop.permute.xlu0 %236
      %v240 = vcombine.high %v218, %v218
      %vm241 = vcmask 31744
      %v243 = vsel %vm241, %v210, 0
      %v246 = vsel %vm241, %v211, 0
      %v249 = vsel %vm241, %v212, 0
      %v252 = vsel %vm241, %v213, 0
      %vm254 = vcmask 1043456
      %v255 = vsel %vm254, %v218, 0
      %v257 = vsel %vm254, %v240, 0
      %259 = vmatprep.subr.mxu0 %v257
      %260 = vmatpush1.msra.mxu0 %v255
      %261 = vmatprep.subr.mxu0 0.0
      %262 = vmatpush1.msra.mxu0 0.0
      %263 = vmatprep.subr.mxu0 0.0
      %264 = vmatpush1.msra.mxu0 0.0
      %265 = vmatprep.subr.mxu0 0.0
      %266 = vmatpush1.msra.mxu0 0.0
      %267 = vmatprep.subr.mxu0 0.0
      %268 = vmatpush1.msra.mxu0 0.0
      %269 = vmatprep.subr.mxu0 0.0
      %270 = vmatpush1.msra.mxu0 0.0
      %271 = vmatprep.subr.mxu0 0.0
      %272 = vmatpush1.msra.mxu0 0.0
      %273 = vmatprep.subr.mxu0 0.0
      %274 = vmatpush1.msra.mxu0 0.0
      %275 = vmatprep.subr.mxu0 0.0
      %276 = vmatpush1.msra.mxu0 0.0
      %277 = vmatprep.subr.mxu0 0.0
      %278 = vmatpush1.msra.mxu0 0.0
      %279 = vmatprep.subr.mxu0 0.0
      %280 = vmatpush1.msra.mxu0 0.0
      %281 = vmatprep.subr.mxu0 0.0
      %282 = vmatpush1.msra.mxu0 0.0
      %283 = vmatprep.subr.mxu0 0.0
      %284 = vmatpush1.msra.mxu0 0.0
      %285 = vmatprep.subr.mxu0 0.0
      %286 = vmatpush1.msra.mxu0 0.0
      %287 = vmatprep.subr.mxu0 0.0
      %288 = vmatpush1.msra.mxu0 0.0
      %289 = vmatprep.subr.mxu0 0.0
      %290 = vmatpush1.msra.mxu0 0.0
      %291 = vmatprep.subr.mxu0 0.0
      %292 = vmatpush1.msra.mxu0 0.0
      %293 = vmatprep.subr.mxu0 0.0
      %294 = vmatpush1.msra.mxu0 0.0
      %295 = vmatprep.subr.mxu0 0.0
      %296 = vmatpush1.msra.mxu0 0.0
      %297 = vmatprep.subr.mxu0 0.0
      %298 = vmatpush1.msra.mxu0 0.0
      %299 = vmatprep.subr.mxu0 0.0
      %300 = vmatpush1.msra.mxu0 0.0
      %301 = vmatprep.subr.mxu0 0.0
      %302 = vmatpush1.msra.mxu0 0.0
      %303 = vmatprep.subr.mxu0 0.0
      %304 = vmatpush1.msra.mxu0 0.0
      %305 = vmatprep.subr.mxu0 0.0
      %306 = vmatpush1.msra.mxu0 0.0
      %307 = vmatprep.subr.mxu0 0.0
      %308 = vmatpush1.msra.mxu0 0.0
      %309 = vmatprep.subr.mxu0 0.0
      %310 = vmatpush1.msra.mxu0 0.0
      %311 = vmatprep.subr.mxu0 0.0
      %312 = vmatpush1.msra.mxu0 0.0
      %313 = vmatprep.subr.mxu0 0.0
      %314 = vmatpush1.msra.mxu0 0.0
      %315 = vmatprep.subr.mxu0 0.0
      %316 = vmatpush1.msra.mxu0 0.0
      %317 = vmatprep.subr.mxu0 0.0
      %318 = vmatpush1.msra.mxu0 0.0
      %319 = vmatprep.subr.mxu0 0.0
      %320 = vmatpush1.msra.mxu0 0.0
      %321 = vmatprep.subr.mxu0 0.0
      %322 = vmatpush1.msra.mxu0 0.0
      %323 = vmatprep.mubr.f32.mxu0 0.0
      %324 = vmatmul.mubr.f32.gmra.mrb[0].mxu0 %v243
      %v325 = vpop.f32.mrb[0].mxu0
      %v326 = vadd.f32 %v222, %v325
      %v327 = vpop.f32.mrb[0].mxu0
      %v328 = vadd.f32 %v222, %v327
      %329 = vmatprep.mubr.f32.mxu0 0.0
      %330 = vmatmul.mubr.f32.gmra.mrb[0].mxu0 %v246
      %v331 = vpop.f32.mrb[0].mxu0
      %v332 = vadd.f32 %v227, %v331
      %v333 = vpop.f32.mrb[0].mxu0
      %v334 = vadd.f32 %v227, %v333
      %335 = vmatprep.mubr.f32.mxu0 0.0
      %336 = vmatmul.mubr.f32.gmra.mrb[0].mxu0 %v249
      %v337 = vpop.f32.mrb[0].mxu0
      %v338 = vadd.f32 %v232, %v337
      %v339 = vpop.f32.mrb[0].mxu0
      %v340 = vadd.f32 %v232, %v339
      %341 = vmatprep.mubr.f32.mxu0 0.0
      %342 = vmatmul.mubr.f32.gmra.mrb[0].mxu0 %v252
      %v343 = vpop.f32.mrb[0].mxu0
      %v344 = vadd.f32 %v237, %v343
      %v345 = vpop.f32.mrb[0].mxu0
      %v346 = vadd.f32 %v237, %v345
      %347 = vdwg.mxu0
      %v348 = vmul.f32 %v326, 0.5
      %v349 = vmul.f32 %v328, 0.5
      %v350 = vmul.f32 %v332, 0.5
      %v351 = vmul.f32 %v334, 0.5
      %v352 = vmul.f32 %v338, 0.5
      %v353 = vmul.f32 %v340, 0.5
      %v354 = vmul.f32 %v344, 0.5
      %v355 = vmul.f32 %v346, 0.5
      %v356 = vtanh.pop %v348
      %v357 = vtanh.pop %v349
      %v358 = vtanh.pop %v350
      %v359 = vtanh.pop %v351
      %v360 = vtanh.pop %v352
      %v361 = vtanh.pop %v353
      %v362 = vtanh.pop %v354
      %v363 = vtanh.pop %v355
      %v364 = vmul.f32 %v356, 0.5
      %v365 = vmul.f32 %v357, 0.5
      %v366 = vmul.f32 %v358, 0.5
      %v367 = vmul.f32 %v359, 0.5
      %v368 = vmul.f32 %v360, 0.5
      %v369 = vmul.f32 %v361, 0.5
      %v370 = vmul.f32 %v362, 0.5
      %v371 = vmul.f32 %v363, 0.5
      %v372 = vadd.f32 %v364, 0.5
      %v373 = vadd.f32 %v365, 0.5
      %v374 = vadd.f32 %v366, 0.5
      %v375 = vadd.f32 %v367, 0.5
      %v376 = vadd.f32 %v368, 0.5
      %v377 = vadd.f32 %v369, 0.5
      %v378 = vadd.f32 %v370, 0.5
      %v379 = vadd.f32 %v371, 0.5
      %380 = vst [vmem:[%s208] sm:$0xff] %v372
      %381 = vst [vmem:[%s208 + $0x8] sm:$0xff] %v373
      %382 = vst [vmem:[%s208 + $0x10] sm:$0xff] %v374
      %383 = vst [vmem:[%s208 + $0x18] sm:$0xff] %v375
      %384 = vst [vmem:[%s208 + $0x20] sm:$0xff] %v376
      %385 = vst [vmem:[%s208 + $0x28] sm:$0xff] %v377
      %386 = vst [vmem:[%s208 + $0x30] sm:$0xff] %v378
      %387 = vst [vmem:[%s208 + $0x38] sm:$0xff] %v379
      %s388 = smul.u32 2, %s19
      %p389 = scmp.lt.s32.totalorder %s18, 1
      %s390 = scalar_select %p389, %s18, 1
      %p391 = scmp.lt.s32.totalorder %s388, 1
      %s392 = scalar_select %p391, %s388, 1
      %s393 = smul.addr %s390, 8
      %s394 = sadd.s32 %s392, %s393
      %s395 = smul.addr %s394, 8
      %s396 = scalar_lea.vmem %s3, %s395
      // Predicated region
      $region33: #{attention_conv_sigmoid_mk1_forward.1} parent=31 // pred_check
        %p397 = pneg %p116
      $region34: #{attention_conv_sigmoid_mk1_forward.1} parent=31 // pred_check_branch
        %399 = sbr.rel (%p397) target = $region36
      $region35: #{attention_conv_sigmoid_mk1_forward.1} parent=31 // pred_region
        %s400 = smul.u32 2, %s19
      $region36: #{attention_conv_sigmoid_mk1_forward.1} parent=31 // pred_fallthru
        _
    $region32: #{attention_conv_sigmoid_mk1_forward.1} parent=5 // pred_fallthru
      _
    %p401 = scmp.le.s32.totalorder 2, %s9
    // Predicated region
    $region37: #{attention_conv_sigmoid_mk1_forward.1} parent=5 // pred_check
      %p402 = pneg %p401
    $region38: #{attention_conv_sigmoid_mk1_forward.1} parent=5 // pred_check_branch
      %404 = sbr.rel (%p402) target = $region40
    $region39: #{attention_conv_sigmoid_mk1_forward.1} parent=5 // pred_region
      %s405 = ssub.s32 %s9, 2
      // Predicated region
      $region41: #{attention_conv_sigmoid_mk1_forward.1} parent=39 // pred_check
        %p406 = pneg %p122
      $region42: #{attention_conv_sigmoid_mk1_forward.1} parent=39 // pred_check_branch
        %408 = sbr.rel (%p406) target = $region44
      $region43: #{attention_conv_sigmoid_mk1_forward.1} parent=39 // pred_region
        %s409 = smul.u32 2, %s21
        %p410 = scmp.lt.s32.totalorder %s20, 1
        %s411 = scalar_select %p410, %s20, 1
        %p412 = scmp.lt.s32.totalorder %s409, 1
        %s413 = scalar_select %p412, %s409, 1
        %s414 = smul.addr %s411, 8
        %s415 = sadd.s32 %s413, %s414
        %s416 = smul.addr %s415, 8
        %s417 = scalar_lea.vmem %s3, %s416
      $region44: #{attention_conv_sigmoid_mk1_forward.1} parent=39 // pred_fallthru
        _
    $region40: #{attention_conv_sigmoid_mk1_forward.1} parent=5 // pred_fallthru
      _
  $region6: #{attention_conv_sigmoid_mk1_forward.1} parent=0 // loop_footer
    %s13 = sadd.s32 1, %s9
  $region7: #{attention_conv_sigmoid_mk1_forward.1} parent=0 // loop_footer_branch
    %8 = sbr.rel target = $region3
  $region8: #{attention_conv_sigmoid_mk1_forward.1} parent=0 // loop_exit
    _

</llo_original>
